<compile_context>
chip_gen: v7x
topology: tpu7x:2x2x1
jax: 0.10.0
libtpu: 0.0.40
codegen_flags: <defaults>
</compile_context>

<pallas_src>
import functools

import jax
import jax.numpy as jnp
import numpy as np
from jax import lax
from jax.experimental import pallas as pl
from jax.experimental.pallas import tpu as pltpu

NEG_INF = -1e9
VMEM_LIMIT = 48 * 1024 * 1024   # above v5e/v6e scoped defaults, below v7x 64 MiB physical


def _pick_tile(dim, cap, align):
    """Largest tile <= cap that divides `dim` and is a multiple of `align`;
    falls back to the full dim (full-extent blocks are always legal)."""
    t = min(cap, dim)
    t -= t % align
    while t >= align:
        if dim % t == 0:
            return t
        t -= align
    return dim


# ----------------------------- Tiled linear kernel: x @ W^T + b -----------------------------
def _linear_kernel(x_ref, w_ref, b_ref, o_ref, acc_ref):
    @pl.when(pl.program_id(2) == 0)
    def _():
        acc_ref[...] = jnp.zeros_like(acc_ref)

    # x: (tm, tk), w: (tn, tk) [torch nn.Linear layout].  Contract the K axes directly so
    # Mosaic feeds the transposed operand to the MXU.  bf16 operands, f32 accumulate.
    acc_ref[...] += lax.dot_general(
        x_ref[...].astype(jnp.bfloat16), w_ref[...].astype(jnp.bfloat16),
        dimension_numbers=(((1,), (1,)), ((), ())),
        preferred_element_type=jnp.float32)

    @pl.when(pl.program_id(2) == pl.num_programs(2) - 1)
    def _():
        o_ref[...] = (acc_ref[...] + b_ref[...]).astype(o_ref.dtype)


def linear_pallas(x2d, w, b, *, out_dtype=None, tm_cap=512, tn_cap=512, tk_cap=1024):
    """x2d: (M, K), w: (N, K) [torch nn.Linear layout], b: (N,) -> (M, N)."""
    M, K = x2d.shape
    N = w.shape[0]
    out_dtype = out_dtype or x2d.dtype
    tm = _pick_tile(M, tm_cap, 8)     # sublane dim of x / out
    tn = _pick_tile(N, tn_cap, 128)   # lane dim of out (and sublane of w)
    tk = _pick_tile(K, tk_cap, 128)   # lane dim of x and w
    # TODO(synk): when N or K is not a 128-multiple we fall back to full-extent blocks
    # (lane-masked stores); for peak store BW pad feature dims to 128-multiples upstream.
    b2d = b.reshape(1, N).astype(jnp.float32)
    grid = (M // tm, N // tn, K // tk)
    return pl.pallas_call(
        _linear_kernel,
        out_shape=jax.ShapeDtypeStruct((M, N), out_dtype),
        grid_spec=pltpu.PrefetchScalarGridSpec(
            num_scalar_prefetch=0,
            grid=grid,
            in_specs=[
                pl.BlockSpec((tm, tk), lambda i, j, k: (i, k)),
                pl.BlockSpec((tn, tk), lambda i, j, k: (j, k)),
                pl.BlockSpec((1, tn), lambda i, j, k: (0, j)),
            ],
            out_specs=pl.BlockSpec((tm, tn), lambda i, j, k: (i, j)),
            scratch_shapes=[pltpu.VMEM((tm, tn), jnp.float32)],
        ),
        compiler_params=pltpu.CompilerParams(
            dimension_semantics=("parallel", "parallel", "arbitrary"),
            vmem_limit_bytes=VMEM_LIMIT),
    )(x2d, w, b2d)


# ----------------------------- Bias-fold prologue kernel ------------------------------------
# bias = softmax(str_mat.masked_fill(mask==0, -1e9), -1), with -1e9 written back at masked
# positions (so the attention kernel needs ONLY this tensor: adding it both supplies the
# softmaxed structural bias and re-masks the scores).
def _bias_fold_kernel(s_ref, m_ref, o_ref):
    masked = m_ref[...] == 0.0
    sm = jnp.where(masked, NEG_INF, s_ref[...])
    sm = jnp.exp(sm - jnp.max(sm, axis=-1, keepdims=True))
    sm = sm * pl.reciprocal(jnp.sum(sm, axis=-1, keepdims=True), approx=True)
    o_ref[...] = jnp.where(masked, NEG_INF, sm)


def fold_bias_pallas(str_mat, attn_mask):
    """(B,H,S,S) str_mat + mask -> single additive bias (B,H,S,S).  Q/K-independent: callers
    that reuse str_mat/attn_mask across forward calls should cache this result."""
    B, H, S, _ = str_mat.shape
    rows = B * H * S
    s2d = str_mat.reshape(rows, S)
    m2d = attn_mask.reshape(rows, S)
    tr_cap = max(8, ((1 << 20) // (S * 4)) // 8 * 8)   # ~1 MiB blocks
    tr = _pick_tile(rows, tr_cap, 8)
    bias = pl.pallas_call(
        _bias_fold_kernel,
        out_shape=jax.ShapeDtypeStruct((rows, S), jnp.float32),
        grid=(rows // tr,),
        in_specs=[pl.BlockSpec((tr, S), lambda i: (i, 0)),
                  pl.BlockSpec((tr, S), lambda i: (i, 0))],
        out_specs=pl.BlockSpec((tr, S), lambda i: (i, 0)),
        compiler_params=pltpu.CompilerParams(
            dimension_semantics=("parallel",),
            vmem_limit_bytes=VMEM_LIMIT),
    )(s2d, m2d)
    return bias.reshape(B, H, S, S)


# ----------------------------- Attention kernel: (batch, q-tile) grid -----------------------
def _attn_kernel(b_ref, q_ref, k_ref, v_ref, o_ref, *, n_head, d_h, inv_scale):
    q = q_ref[...]          # (H, tq, d_h)  bf16
    k = k_ref[...]          # (H, S,  d_h)  bf16 (VMEM-resident across the q-tile axis)
    v = v_ref[...]          # (H, S,  d_h)  bf16
    bias = b_ref[...]       # (H, tq, S)    f32: softmax(masked str_mat) + (-1e9 at masked)

    # scores = q @ k^T / d_h + softmax(str_mat), re-masked via the folded -1e9 in `bias`
    scores = jnp.einsum('hqd,hkd->hqk', q, k,
                        preferred_element_type=jnp.float32) * inv_scale + bias
    p = jnp.exp(scores - jnp.max(scores, axis=-1, keepdims=True))
    p = p * pl.reciprocal(jnp.sum(p, axis=-1, keepdims=True), approx=True)
    # TODO(synk): nn.Dropout on `prob` is identity in the deterministic (eval) forward; skipped.

    o = jnp.einsum('hqk,hkd->hqd', p.astype(v.dtype), v,
                   preferred_element_type=jnp.float32)          # (H, tq, d_h) f32
    # Write each head directly at its lane offset of the lane-dense (tq, H*d_h) output block
    # (== torch's transpose(1,2).contiguous().view(b,-1,F)) -> no concat/transpose relayout.
    for h in range(n_head):
        o_ref[:, h * d_h:(h + 1) * d_h] = o[h].astype(o_ref.dtype)


def attention_pallas(q, k, v, bias):
    B, H, S, Dh = q.shape
    F = H * Dh
    # q-tile chosen so the dominant (H, tq, S) f32 bias block stays ~<=2 MiB (double-buffered
    # blocks + live f32 temporaries then fit v5e's 16 MiB scoped default and v7x's 64 MiB).
    tq_cap = max(8, ((2 << 20) // (H * S * 4)) // 8 * 8)
    tq = _pick_tile(S, tq_cap, 8)
    # TODO(synk): for very long S the KV axis should additionally be tiled flash-style;
    # full-S K/V blocks are fine at the sizes used here.
    return pl.pallas_call(
        functools.partial(_attn_kernel, n_head=H, d_h=Dh, inv_scale=1.0 / float(Dh)),
        out_shape=jax.ShapeDtypeStruct((B, S, F), q.dtype),
        grid=(B, S // tq),
        in_specs=[
            pl.BlockSpec((None, H, tq, S), lambda b, qi: (b, 0, qi, 0)),   # folded bias
            pl.BlockSpec((None, H, tq, Dh), lambda b, qi: (b, 0, qi, 0)),  # q tile
            pl.BlockSpec((None, H, S, Dh), lambda b, qi: (b, 0, 0, 0)),    # k (qi-invariant)
            pl.BlockSpec((None, H, S, Dh), lambda b, qi: (b, 0, 0, 0)),    # v (qi-invariant)
        ],
        out_specs=pl.BlockSpec((None, tq, F), lambda b, qi: (b, qi, 0)),
        compiler_params=pltpu.CompilerParams(
            dimension_semantics=("parallel", "parallel"),
            vmem_limit_bytes=VMEM_LIMIT),
    )(bias, q, k, v)


# ----------------------------- Parameter prep (done once, hoisted out of forward) -----------
def prepare_params(params, mxu_dtype=jnp.bfloat16):
    wq, bq, wk, bk, wv, bv, wo, bo = params
    w_qkv = jnp.concatenate([wq, wk, wv], axis=0).astype(mxu_dtype)   # (3F, F), torch layout
    b_qkv = jnp.concatenate([bq, bk, bv], axis=0)                     # (3F,), f32
    return (w_qkv, b_qkv, wo.astype(mxu_dtype), bo)


# ----------------------------- Full module forward ------------------------------------------
def mh_inr_attn(x, str_mat, attn_mask, prepared_params, n_head):
    w_qkv, b_qkv, wo, bo = prepared_params
    B, S, Feat = x.shape
    d_h = Feat // n_head

    # Mask-folded additive bias (one (B,H,S,S) tensor for the attention kernel).
    # TODO(synk): if str_mat/attn_mask are reused across calls, cache this result.
    bias = fold_bias_pallas(str_mat, attn_mask)

    # Fused QKV projection: one launch, x read from HBM once, 3x wider N for the MXU.
    # Intermediate stored bf16 (it only feeds MXU operands downstream) -> half the HBM traffic.
    qkv = linear_pallas(x.reshape(B * S, Feat), w_qkv, b_qkv, out_dtype=jnp.bfloat16)

    # Mirrors torch's `.view(b, n_head, -1, d_h)` on the contiguous (B, S, F) projection
    # output (a plain row-major reshape, NOT the usual transpose head-split).
    q, k, v = jnp.split(qkv, 3, axis=-1)
    q = q.reshape(B, n_head, S, d_h)
    k = k.reshape(B, n_head, S, d_h)
    v = v.reshape(B, n_head, S, d_h)

    # Attention writes directly in (B, S, H*d_h) layout -> no wrapper transpose / HBM round trip.
    attn = attention_pallas(q, k, v, bias)                 # (B, S, F) bf16

    out = linear_pallas(attn.reshape(B * S, Feat), wo, bo, out_dtype=x.dtype)
    return out.reshape(B, S, Feat)


# ----------------------------- Pure-JAX reference (for verification) ------------------------
def mh_inr_attn_ref(x, str_mat, attn_mask, params, n_head):
    wq, bq, wk, bk, wv, bv, wo, bo = params
    B, S, Feat = x.shape
    d_h = Feat // n_head
    lin = lambda t, w, b: t @ w.T + b
    q = lin(x, wq, bq).reshape(B, n_head, S, d_h)
    k = lin(x, wk, bk).reshape(B, n_head, S, d_h)
    v = lin(x, wv, bv).reshape(B, n_head, S, d_h)
    sm = jnp.where(attn_mask == 0.0, NEG_INF, str_mat)
    sm = jax.nn.softmax(sm, axis=-1)
    scores = q @ jnp.swapaxes(k, -1, -2) / d_h + sm
    scores = jnp.where(attn_mask == 0.0, NEG_INF, scores)
    prob = jax.nn.softmax(scores, axis=-1)
    o = prob @ v
    o = jnp.swapaxes(o, 1, 2).reshape(B, S, Feat)
    return lin(o, wo, bo)


if __name__ == "__main__":
    B, S, F, H = 2, 16, 32, 4

    key = jax.random.PRNGKey(0)
    keys = jax.random.split(key, 12)
    bound = 1.0 / np.sqrt(F)

    def u(k, shape):
        return jax.random.uniform(k, shape, jnp.float32, -bound, bound)

    # nn.Linear(features, features) x4 : weight (F, F), bias (F,)
    params = (u(keys[0], (F, F)), u(keys[1], (F,)),
              u(keys[2], (F, F)), u(keys[3], (F,)),
              u(keys[4], (F, F)), u(keys[5], (F,)),
              u(keys[6], (F, F)), u(keys[7], (F,)))

    x = jax.random.normal(keys[8], (B, S, F), jnp.float32)
    str_mat = jax.random.normal(keys[9], (B, H, S, S), jnp.float32)
    attn_mask = (jax.random.uniform(keys[10], (B, H, S, S)) > 0.2).astype(jnp.float32)

    prepared = prepare_params(params)          # hoisted out of the forward (done once)
    out = mh_inr_attn(x, str_mat, attn_mask, prepared, H)
    jax.block_until_ready(out)

    ref = mh_inr_attn_ref(x, str_mat, attn_mask, params, H)
    # Tolerance accounts for bf16 MXU operands (f32 accumulation) and the EUP approximate
    # reciprocals in the two softmax normalizations; the maskless/float path is exact f32.
    np.testing.assert_allclose(np.asarray(out), np.asarray(ref), rtol=2e-2, atol=2e-2)

    print("KERNEL_OK")
</pallas_src>

<mosaic_0001>
module attributes {stable_mosaic.version = 11 : i64} {
  func.func @_bias_fold_kernel(%arg0: i32, %arg1: memref<128x16xf32, #tpu.memory_space<vmem>>, %arg2: memref<128x16xf32, #tpu.memory_space<vmem>>, %arg3: memref<128x16xf32, #tpu.memory_space<vmem>>) attributes {dimension_semantics = [#tpu.dimension_semantics<parallel>], iteration_bounds = array<i64: 1>, scalar_prefetch = 0 : i64, scratch_operands = 0 : i64, tpu.core_type = #tpu.core_type<tc>, window_params = [{transform_indices = @transform_0, window_bounds = array<i64: 128, 16>}, {transform_indices = @transform_1, window_bounds = array<i64: 128, 16>}, {transform_indices = @transform_2, window_bounds = array<i64: 128, 16>}]} {
    %c0 = arith.constant 0 : index
    %c0_0 = arith.constant 0 : index
    %0 = vector.load %arg2[%c0, %c0_0] : memref<128x16xf32, #tpu.memory_space<vmem>>, vector<128x16xf32>
    %cst = arith.constant 0.000000e+00 : f32
    %1 = vector.broadcast %cst : f32 to vector<128x16xf32>
    %2 = arith.cmpf oeq, %0, %1 : vector<128x16xf32>
    %c0_1 = arith.constant 0 : index
    %c0_2 = arith.constant 0 : index
    %3 = vector.load %arg1[%c0_1, %c0_2] : memref<128x16xf32, #tpu.memory_space<vmem>>, vector<128x16xf32>
    %cst_3 = arith.constant -1.000000e+09 : f32
    %4 = vector.broadcast %cst_3 : f32 to vector<128x16xf32>
    %5 = arith.select %2, %4, %3 : vector<128x16xi1>, vector<128x16xf32>
    %cst_4 = arith.constant dense<0xFF800000> : vector<128xf32>
    %6 = vector.multi_reduction <maximumf>, %5, %cst_4 [1] : vector<128x16xf32> to vector<128xf32>
    %7 = vector.shape_cast %6 : vector<128xf32> to vector<128x1xf32>
    %8 = vector.broadcast %7 : vector<128x1xf32> to vector<128x16xf32>
    %9 = arith.subf %5, %8 : vector<128x16xf32>
    %10 = math.exp %9 : vector<128x16xf32>
    %cst_5 = arith.constant dense<0.000000e+00> : vector<128xf32>
    %11 = vector.multi_reduction <add>, %10, %cst_5 [1] : vector<128x16xf32> to vector<128xf32>
    %12 = vector.shape_cast %11 : vector<128xf32> to vector<128x1xf32>
    %13 = tpu.reciprocal %12 {approx = true} : vector<128x1xf32> -> vector<128x1xf32>
    %14 = vector.broadcast %13 : vector<128x1xf32> to vector<128x16xf32>
    %15 = arith.mulf %10, %14 : vector<128x16xf32>
    %cst_6 = arith.constant -1.000000e+09 : f32
    %16 = vector.broadcast %cst_6 : f32 to vector<128x16xf32>
    %17 = arith.select %2, %16, %15 : vector<128x16xi1>, vector<128x16xf32>
    %c0_7 = arith.constant 0 : index
    %c0_8 = arith.constant 0 : index
    %18 = vector.load %arg3[%c0_7, %c0_8] : memref<128x16xf32, #tpu.memory_space<vmem>>, vector<128x16xf32>
    tpu.vector_store %arg3[%c0_7, %c0_8], %17 {strides = array<i32>} : memref<128x16xf32, #tpu.memory_space<vmem>>, vector<128x16xf32>,
    return
  }
  func.func @transform_0(%arg0: i32) -> (i32, i32) {
    %c0_i32 = arith.constant 0 : i32
    %c0_i32_0 = arith.constant 0 : i32
    return %arg0, %c0_i32 : i32, i32
  }
  func.func @transform_1(%arg0: i32) -> (i32, i32) {
    %c0_i32 = arith.constant 0 : i32
    %c0_i32_0 = arith.constant 0 : i32
    return %arg0, %c0_i32 : i32, i32
  }
  func.func @transform_2(%arg0: i32) -> (i32, i32) {
    %c0_i32 = arith.constant 0 : i32
    %c0_i32_0 = arith.constant 0 : i32
    return %arg0, %c0_i32 : i32, i32
  }
}

</mosaic_0001>

<llo_original>
// kernel: tpu_custom_call.1
$region0: #{tpu_custom_call.1}
  #allocation0 [shape = 'u32[]', space=smem, size = 0x4, offset = 0x4, fixed_abs, tag = 'smem constant byte address 0x4 - core index']
  #allocation1 [shape = 'u32[144,128]{1,0:T(1,128)}', space=vmem, size = 0x12000, scoped, tag = 'internal scratch']
  %s0 = inlined_call_operand.vmem [shape: f32[128,16], index: 0, kind: input, shape index: {}]
  %s1 = inlined_call_operand.vmem [shape: f32[128,16], index: 1, kind: input, shape index: {}]
  %s2 = inlined_call_operand.vmem [shape: f32[128,16], index: 2, kind: output, shape index: {}]
  %s3 = sld [smem:[#allocation0]]
  $region18: #{tpu_custom_call.1} parent=0
    _
  %s5 = ssub.s32 1, %s3
  %s6 = scalar_select 0, %s5, %s3
  // Predicated region
  $region2: #{tpu_custom_call.1} parent=0 // pred_check
    _
  $region3: #{tpu_custom_call.1} parent=0 // pred_check_branch
    %8 = sbr.rel (0) target = $region5
  $region4: #{tpu_custom_call.1} parent=0 // pred_region
    _
  $region5: #{tpu_custom_call.1} parent=0 // pred_fallthru
    _
  // Predicated region
  $region6: #{tpu_custom_call.1} parent=0 // pred_check
    _
  $region7: #{tpu_custom_call.1} parent=0 // pred_check_branch
    %10 = sbr.rel (0) target = $region9
  $region8: #{tpu_custom_call.1} parent=0 // pred_region
    _
  $region9: #{tpu_custom_call.1} parent=0 // pred_fallthru
    _
  %v11 = vld [vmem:[%s1] sm:$0xff]
  %v12 = vld [vmem:[%s1 + $0x8] sm:$0xff]
  %v13 = vld [vmem:[%s1 + $0x10] sm:$0xff]
  %v14 = vld [vmem:[%s1 + $0x18] sm:$0xff]
  %v15 = vld [vmem:[%s1 + $0x20] sm:$0xff]
  %v16 = vld [vmem:[%s1 + $0x28] sm:$0xff]
  %v17 = vld [vmem:[%s1 + $0x30] sm:$0xff]
  %v18 = vld [vmem:[%s1 + $0x38] sm:$0xff]
  %v19 = vld [vmem:[%s1 + $0x40] sm:$0xff]
  %v20 = vld [vmem:[%s1 + $0x48] sm:$0xff]
  %v21 = vld [vmem:[%s1 + $0x50] sm:$0xff]
  %v22 = vld [vmem:[%s1 + $0x58] sm:$0xff]
  %v23 = vld [vmem:[%s1 + $0x60] sm:$0xff]
  %v24 = vld [vmem:[%s1 + $0x68] sm:$0xff]
  %v25 = vld [vmem:[%s1 + $0x70] sm:$0xff]
  %v26 = vld [vmem:[%s1 + $0x78] sm:$0xff]
  %vm27 = vcmp.eq.f32.partialorder %v11, 0.0
  %vm28 = vcmp.eq.f32.partialorder %v12, 0.0
  %vm29 = vcmp.eq.f32.partialorder %v13, 0.0
  %vm30 = vcmp.eq.f32.partialorder %v14, 0.0
  %vm31 = vcmp.eq.f32.partialorder %v15, 0.0
  %vm32 = vcmp.eq.f32.partialorder %v16, 0.0
  %vm33 = vcmp.eq.f32.partialorder %v17, 0.0
  %vm34 = vcmp.eq.f32.partialorder %v18, 0.0
  %vm35 = vcmp.eq.f32.partialorder %v19, 0.0
  %vm36 = vcmp.eq.f32.partialorder %v20, 0.0
  %vm37 = vcmp.eq.f32.partialorder %v21, 0.0
  %vm38 = vcmp.eq.f32.partialorder %v22, 0.0
  %vm39 = vcmp.eq.f32.partialorder %v23, 0.0
  %vm40 = vcmp.eq.f32.partialorder %v24, 0.0
  %vm41 = vcmp.eq.f32.partialorder %v25, 0.0
  %vm42 = vcmp.eq.f32.partialorder %v26, 0.0
  %v43 = vld [vmem:[%s0] sm:$0xff]
  %v44 = vld [vmem:[%s0 + $0x8] sm:$0xff]
  %v45 = vld [vmem:[%s0 + $0x10] sm:$0xff]
  %v46 = vld [vmem:[%s0 + $0x18] sm:$0xff]
  %v47 = vld [vmem:[%s0 + $0x20] sm:$0xff]
  %v48 = vld [vmem:[%s0 + $0x28] sm:$0xff]
  %v49 = vld [vmem:[%s0 + $0x30] sm:$0xff]
  %v50 = vld [vmem:[%s0 + $0x38] sm:$0xff]
  %v51 = vld [vmem:[%s0 + $0x40] sm:$0xff]
  %v52 = vld [vmem:[%s0 + $0x48] sm:$0xff]
  %v53 = vld [vmem:[%s0 + $0x50] sm:$0xff]
  %v54 = vld [vmem:[%s0 + $0x58] sm:$0xff]
  %v55 = vld [vmem:[%s0 + $0x60] sm:$0xff]
  %v56 = vld [vmem:[%s0 + $0x68] sm:$0xff]
  %v57 = vld [vmem:[%s0 + $0x70] sm:$0xff]
  %v58 = vld [vmem:[%s0 + $0x78] sm:$0xff]
  %v59 = vsel %vm27, -1e+09, %v43
  %v60 = vsel %vm28, -1e+09, %v44
  %v61 = vsel %vm29, -1e+09, %v45
  %v62 = vsel %vm30, -1e+09, %v46
  %v63 = vsel %vm31, -1e+09, %v47
  %v64 = vsel %vm32, -1e+09, %v48
  %v65 = vsel %vm33, -1e+09, %v49
  %v66 = vsel %vm34, -1e+09, %v50
  %v67 = vsel %vm35, -1e+09, %v51
  %v68 = vsel %vm36, -1e+09, %v52
  %v69 = vsel %vm37, -1e+09, %v53
  %v70 = vsel %vm38, -1e+09, %v54
  %v71 = vsel %vm39, -1e+09, %v55
  %v72 = vsel %vm40, -1e+09, %v56
  %v73 = vsel %vm41, -1e+09, %v57
  %v74 = vsel %vm42, -1e+09, %v58
  %vm75 = vcmask 130048
  %v76 = vsel %vm75, %v59, -inf
  %77 = vmax.xlane.f32.xlu0 %v76
  %v78 = vpop.xlane.xlu0 %77
  %v79 = vsel %vm75, %v60, -inf
  %80 = vmax.xlane.f32.xlu0 %v79
  %v81 = vpop.xlane.xlu0 %80
  %v82 = vsel %vm75, %v61, -inf
  %83 = vmax.xlane.f32.xlu0 %v82
  %v84 = vpop.xlane.xlu0 %83
  %v85 = vsel %vm75, %v62, -inf
  %86 = vmax.xlane.f32.xlu0 %v85
  %v87 = vpop.xlane.xlu0 %86
  %v88 = vsel %vm75, %v63, -inf
  %89 = vmax.xlane.f32.xlu0 %v88
  %v90 = vpop.xlane.xlu0 %89
  %v91 = vsel %vm75, %v64, -inf
  %92 = vmax.xlane.f32.xlu0 %v91
  %v93 = vpop.xlane.xlu0 %92
  %v94 = vsel %vm75, %v65, -inf
  %95 = vmax.xlane.f32.xlu0 %v94
  %v96 = vpop.xlane.xlu0 %95
  %v97 = vsel %vm75, %v66, -inf
  %98 = vmax.xlane.f32.xlu0 %v97
  %v99 = vpop.xlane.xlu0 %98
  %v100 = vsel %vm75, %v67, -inf
  %101 = vmax.xlane.f32.xlu0 %v100
  %v102 = vpop.xlane.xlu0 %101
  %v103 = vsel %vm75, %v68, -inf
  %104 = vmax.xlane.f32.xlu0 %v103
  %v105 = vpop.xlane.xlu0 %104
  %v106 = vsel %vm75, %v69, -inf
  %107 = vmax.xlane.f32.xlu0 %v106
  %v108 = vpop.xlane.xlu0 %107
  %v109 = vsel %vm75, %v70, -inf
  %110 = vmax.xlane.f32.xlu0 %v109
  %v111 = vpop.xlane.xlu0 %110
  %v112 = vsel %vm75, %v71, -inf
  %113 = vmax.xlane.f32.xlu0 %v112
  %v114 = vpop.xlane.xlu0 %113
  %v115 = vsel %vm75, %v72, -inf
  %116 = vmax.xlane.f32.xlu0 %v115
  %v117 = vpop.xlane.xlu0 %116
  %v118 = vsel %vm75, %v73, -inf
  %119 = vmax.xlane.f32.xlu0 %v118
  %v120 = vpop.xlane.xlu0 %119
  %v121 = vsel %vm75, %v74, -inf
  %122 = vmax.xlane.f32.xlu0 %v121
  %v123 = vpop.xlane.xlu0 %122
  %v124 = vsub.f32 %v59, %v78
  %v125 = vsub.f32 %v60, %v81
  %v126 = vsub.f32 %v61, %v84
  %v127 = vsub.f32 %v62, %v87
  %v128 = vsub.f32 %v63, %v90
  %v129 = vsub.f32 %v64, %v93
  %v130 = vsub.f32 %v65, %v96
  %v131 = vsub.f32 %v66, %v99
  %v132 = vsub.f32 %v67, %v102
  %v133 = vsub.f32 %v68, %v105
  %v134 = vsub.f32 %v69, %v108
  %v135 = vsub.f32 %v70, %v111
  %v136 = vsub.f32 %v71, %v114
  %v137 = vsub.f32 %v72, %v117
  %v138 = vsub.f32 %v73, %v120
  %v139 = vsub.f32 %v74, %v123
  %v140 = vmul.f32 %v124, 1.442695
  %v141 = vpow.pop %v140
  %v142 = vmul.f32 %v125, 1.442695
  %v143 = vpow.pop %v142
  %v144 = vmul.f32 %v126, 1.442695
  %v145 = vpow.pop %v144
  %v146 = vmul.f32 %v127, 1.442695
  %v147 = vpow.pop %v146
  %v148 = vmul.f32 %v128, 1.442695
  %v149 = vpow.pop %v148
  %v150 = vmul.f32 %v129, 1.442695
  %v151 = vpow.pop %v150
  %v152 = vmul.f32 %v130, 1.442695
  %v153 = vpow.pop %v152
  %v154 = vmul.f32 %v131, 1.442695
  %v155 = vpow.pop %v154
  %v156 = vmul.f32 %v132, 1.442695
  %v157 = vpow.pop %v156
  %v158 = vmul.f32 %v133, 1.442695
  %v159 = vpow.pop %v158
  %v160 = vmul.f32 %v134, 1.442695
  %v161 = vpow.pop %v160
  %v162 = vmul.f32 %v135, 1.442695
  %v163 = vpow.pop %v162
  %v164 = vmul.f32 %v136, 1.442695
  %v165 = vpow.pop %v164
  %v166 = vmul.f32 %v137, 1.442695
  %v167 = vpow.pop %v166
  %v168 = vmul.f32 %v138, 1.442695
  %v169 = vpow.pop %v168
  %v170 = vmul.f32 %v139, 1.442695
  %v171 = vpow.pop %v170
  %v172 = vsel %vm75, %v141, 0.0
  %173 = vadd.xlane.f32.xlu0 %v172
  %v174 = vpop.xlane.xlu0 %173
  %v175 = vsel %vm75, %v143, 0.0
  %176 = vadd.xlane.f32.xlu0 %v175
  %v177 = vpop.xlane.xlu0 %176
  %v178 = vsel %vm75, %v145, 0.0
  %179 = vadd.xlane.f32.xlu0 %v178
  %v180 = vpop.xlane.xlu0 %179
  %v181 = vsel %vm75, %v147, 0.0
  %182 = vadd.xlane.f32.xlu0 %v181
  %v183 = vpop.xlane.xlu0 %182
  %v184 = vsel %vm75, %v149, 0.0
  %185 = vadd.xlane.f32.xlu0 %v184
  %v186 = vpop.xlane.xlu0 %185
  %v187 = vsel %vm75, %v151, 0.0
  %188 = vadd.xlane.f32.xlu0 %v187
  %v189 = vpop.xlane.xlu0 %188
  %v190 = vsel %vm75, %v153, 0.0
  %191 = vadd.xlane.f32.xlu0 %v190
  %v192 = vpop.xlane.xlu0 %191
  %v193 = vsel %vm75, %v155, 0.0
  %194 = vadd.xlane.f32.xlu0 %v193
  %v195 = vpop.xlane.xlu0 %194
  %v196 = vsel %vm75, %v157, 0.0
  %197 = vadd.xlane.f32.xlu0 %v196
  %v198 = vpop.xlane.xlu0 %197
  %v199 = vsel %vm75, %v159, 0.0
  %200 = vadd.xlane.f32.xlu0 %v199
  %v201 = vpop.xlane.xlu0 %200
  %v202 = vsel %vm75, %v161, 0.0
  %203 = vadd.xlane.f32.xlu0 %v202
  %v204 = vpop.xlane.xlu0 %203
  %v205 = vsel %vm75, %v163, 0.0
  %206 = vadd.xlane.f32.xlu0 %v205
  %v207 = vpop.xlane.xlu0 %206
  %v208 = vsel %vm75, %v165, 0.0
  %209 = vadd.xlane.f32.xlu0 %v208
  %v210 = vpop.xlane.xlu0 %209
  %v211 = vsel %vm75, %v167, 0.0
  %212 = vadd.xlane.f32.xlu0 %v211
  %v213 = vpop.xlane.xlu0 %212
  %v214 = vsel %vm75, %v169, 0.0
  %215 = vadd.xlane.f32.xlu0 %v214
  %v216 = vpop.xlane.xlu0 %215
  %v217 = vsel %vm75, %v171, 0.0
  %218 = vadd.xlane.f32.xlu0 %v217
  %v219 = vpop.xlane.xlu0 %218
  %v220 = vrcp.pop %v174
  %v221 = vrcp.pop %v177
  %v222 = vrcp.pop %v180
  %v223 = vrcp.pop %v183
  %v224 = vrcp.pop %v186
  %v225 = vrcp.pop %v189
  %v226 = vrcp.pop %v192
  %v227 = vrcp.pop %v195
  %v228 = vrcp.pop %v198
  %v229 = vrcp.pop %v201
  %v230 = vrcp.pop %v204
  %v231 = vrcp.pop %v207
  %v232 = vrcp.pop %v210
  %v233 = vrcp.pop %v213
  %v234 = vrcp.pop %v216
  %v235 = vrcp.pop %v219
  %v236 = vmul.f32 %v141, %v220
  %v237 = vmul.f32 %v143, %v221
  %v238 = vmul.f32 %v145, %v222
  %v239 = vmul.f32 %v147, %v223
  %v240 = vmul.f32 %v149, %v224
  %v241 = vmul.f32 %v151, %v225
  %v242 = vmul.f32 %v153, %v226
  %v243 = vmul.f32 %v155, %v227
  %v244 = vmul.f32 %v157, %v228
  %v245 = vmul.f32 %v159, %v229
  %v246 = vmul.f32 %v161, %v230
  %v247 = vmul.f32 %v163, %v231
  %v248 = vmul.f32 %v165, %v232
  %v249 = vmul.f32 %v167, %v233
  %v250 = vmul.f32 %v169, %v234
  %v251 = vmul.f32 %v171, %v235
  %v252 = vsel %vm27, -1e+09, %v236
  %v253 = vsel %vm28, -1e+09, %v237
  %v254 = vsel %vm29, -1e+09, %v238
  %v255 = vsel %vm30, -1e+09, %v239
  %v256 = vsel %vm31, -1e+09, %v240
  %v257 = vsel %vm32, -1e+09, %v241
  %v258 = vsel %vm33, -1e+09, %v242
  %v259 = vsel %vm34, -1e+09, %v243
  %v260 = vsel %vm35, -1e+09, %v244
  %v261 = vsel %vm36, -1e+09, %v245
  %v262 = vsel %vm37, -1e+09, %v246
  %v263 = vsel %vm38, -1e+09, %v247
  %v264 = vsel %vm39, -1e+09, %v248
  %v265 = vsel %vm40, -1e+09, %v249
  %v266 = vsel %vm41, -1e+09, %v250
  %v267 = vsel %vm42, -1e+09, %v251
  %268 = vst.msk [vmem:[%s2] sm:$0xff] %vm75, %v252
  %269 = vst.msk [vmem:[%s2 + $0x8] sm:$0xff] %vm75, %v253
  %270 = vst.msk [vmem:[%s2 + $0x10] sm:$0xff] %vm75, %v254
  %271 = vst.msk [vmem:[%s2 + $0x18] sm:$0xff] %vm75, %v255
  %272 = vst.msk [vmem:[%s2 + $0x20] sm:$0xff] %vm75, %v256
  %273 = vst.msk [vmem:[%s2 + $0x28] sm:$0xff] %vm75, %v257
  %274 = vst.msk [vmem:[%s2 + $0x30] sm:$0xff] %vm75, %v258
  %275 = vst.msk [vmem:[%s2 + $0x38] sm:$0xff] %vm75, %v259
  %276 = vst.msk [vmem:[%s2 + $0x40] sm:$0xff] %vm75, %v260
  %277 = vst.msk [vmem:[%s2 + $0x48] sm:$0xff] %vm75, %v261
  %278 = vst.msk [vmem:[%s2 + $0x50] sm:$0xff] %vm75, %v262
  %279 = vst.msk [vmem:[%s2 + $0x58] sm:$0xff] %vm75, %v263
  %280 = vst.msk [vmem:[%s2 + $0x60] sm:$0xff] %vm75, %v264
  %281 = vst.msk [vmem:[%s2 + $0x68] sm:$0xff] %vm75, %v265
  %282 = vst.msk [vmem:[%s2 + $0x70] sm:$0xff] %vm75, %v266
  %283 = vst.msk [vmem:[%s2 + $0x78] sm:$0xff] %vm75, %v267
  // Predicated region
  $region10: #{tpu_custom_call.1} parent=0 // pred_check
    _
  $region11: #{tpu_custom_call.1} parent=0 // pred_check_branch
    %285 = sbr.rel (0) target = $region13
  $region12: #{tpu_custom_call.1} parent=0 // pred_region
    _
  $region13: #{tpu_custom_call.1} parent=0 // pred_fallthru
    _
  // Predicated region
  $region14: #{tpu_custom_call.1} parent=0 // pred_check
    _
  $region15: #{tpu_custom_call.1} parent=0 // pred_check_branch
    %287 = sbr.rel (0) target = $region17
  $region16: #{tpu_custom_call.1} parent=0 // pred_region
    _
  $region17: #{tpu_custom_call.1} parent=0 // pred_fallthru
    _

</llo_original>
